<compile_context>
chip_gen: v5e
topology: v5e:2x2
jax: 0.10.0
libtpu: 0.0.40
codegen_flags: <defaults>
</compile_context>

<pallas_src>
import functools

import jax
import jax.numpy as jnp
from jax.experimental import pallas as pl
from jax.experimental.pallas import tpu as pltpu

_LANE = 128
_SUBLANE = 8


def _round_up(n, m):
    return ((n + m - 1) // m) * m


# --------------------------------------------------------------------------- #
# Kernel bodies (one grid step = one TM-row tile of x / out; weights resident)
# --------------------------------------------------------------------------- #
def _resblock_kernel_shortcut(x_ref, w0_ref, b0_ref, w1_ref, b1_ref, ws_ref, o_ref):
    """ResnetBlockFC with a linear (bias-free) shortcut."""
    x = x_ref[...]
    xr = jnp.maximum(x, 0).astype(w0_ref.dtype)
    h = jnp.dot(xr, w0_ref[...], preferred_element_type=jnp.float32) + b0_ref[...]
    hr = jnp.maximum(h, 0.0).astype(w1_ref.dtype)   # keep MXU operand in compute dtype
    dx = jnp.dot(hr, w1_ref[...], preferred_element_type=jnp.float32) + b1_ref[...]
    x_s = jnp.dot(x.astype(ws_ref.dtype), ws_ref[...], preferred_element_type=jnp.float32)
    o_ref[...] = (x_s + dx).astype(o_ref.dtype)


def _resblock_kernel_identity(x_ref, w0_ref, b0_ref, w1_ref, b1_ref, o_ref):
    """ResnetBlockFC with identity shortcut (size_in == size_out)."""
    x = x_ref[...]
    xr = jnp.maximum(x, 0).astype(w0_ref.dtype)
    h = jnp.dot(xr, w0_ref[...], preferred_element_type=jnp.float32) + b0_ref[...]
    hr = jnp.maximum(h, 0.0).astype(w1_ref.dtype)
    dx = jnp.dot(hr, w1_ref[...], preferred_element_type=jnp.float32) + b1_ref[...]
    o_ref[...] = (x.astype(jnp.float32) + dx).astype(o_ref.dtype)


# --------------------------------------------------------------------------- #
# Generation-aware tile sizing
# --------------------------------------------------------------------------- #
def _vmem_capacity_bytes():
    try:
        return int(pltpu.get_tpu_info().vmem_capacity_bytes)
    except Exception:
        return 64 * 1024 * 1024  # conservative (v7x per-TC VMEM)


def _choose_block_m(m, size_in_p, size_h_p, size_out_p, itemsize):
    """Pick the largest M-tile that keeps double-buffered tiles well under VMEM."""
    budget = _vmem_capacity_bytes() // 4  # headroom for weights, f32 temps, 2x buffers
    per_row = (2 * (size_in_p + size_out_p) * itemsize          # pipelined x/out tiles
               + 4 * (size_h_p + 2 * size_out_p))               # f32 intermediates
    tm = budget // max(per_row, 1)
    tm = max(_SUBLANE, min(tm, 2048, _round_up(m, _SUBLANE)))
    return (tm // _SUBLANE) * _SUBLANE


# --------------------------------------------------------------------------- #
# Wrapper
# --------------------------------------------------------------------------- #
@functools.partial(jax.jit, static_argnames=("has_shortcut", "compute_dtype", "block_m"))
def resnet_block_fc(x, w0, b0, w1, b1, ws=None, *, has_shortcut=True,
                    compute_dtype=None, block_m=None):
    """Fused ResnetBlockFC forward.

    Args:
      x  : (M, size_in)
      w0 : (size_in, size_h)     (transposed PyTorch fc_0.weight)
      b0 : (1, size_h)
      w1 : (size_h, size_out)    (transposed PyTorch fc_1.weight)
      b1 : (1, size_out)
      ws : (size_in, size_out) or None (transposed shortcut weight)
      compute_dtype : e.g. jnp.bfloat16 for MXU-native matmuls (f32 accumulation).
      block_m : override the auto-chosen M tile.
    """
    out_dtype = x.dtype
    m, size_in = x.shape
    size_h = w0.shape[1]
    size_out = w1.shape[1]

    cdt = jnp.dtype(compute_dtype) if compute_dtype is not None else x.dtype

    # Pad feature dims to lane (128) multiples: lane-dense stores + full MXU tiles.
    in_p = _round_up(size_in, _LANE)
    h_p = _round_up(size_h, _LANE)
    out_p = _round_up(size_out, _LANE)

    x_c = x.astype(cdt)
    w0_c = jnp.pad(w0.astype(cdt), ((0, in_p - size_in), (0, h_p - size_h)))
    w1_c = jnp.pad(w1.astype(cdt), ((0, h_p - size_h), (0, out_p - size_out)))
    b0_f = jnp.pad(b0.astype(jnp.float32), ((0, 0), (0, h_p - size_h)))
    b1_f = jnp.pad(b1.astype(jnp.float32), ((0, 0), (0, out_p - size_out)))

    tm = block_m if block_m is not None else _choose_block_m(
        m, in_p, h_p, out_p, x_c.dtype.itemsize)
    m_p = _round_up(max(m, tm), tm)
    x_c = jnp.pad(x_c, ((0, m_p - m), (0, in_p - size_in)))

    grid = (m_p // tm,)

    # x / out tiles walk the M grid axis; weights & biases stay resident (index 0).
    x_spec = pl.BlockSpec((tm, in_p), lambda i: (i, 0))
    o_spec = pl.BlockSpec((tm, out_p), lambda i: (i, 0))
    w0_spec = pl.BlockSpec((in_p, h_p), lambda i: (0, 0))
    b0_spec = pl.BlockSpec((1, h_p), lambda i: (0, 0))
    w1_spec = pl.BlockSpec((h_p, out_p), lambda i: (0, 0))
    b1_spec = pl.BlockSpec((1, out_p), lambda i: (0, 0))
    # TODO(synk): on v7x, if VMEM gets tight for very large TM, add
    # pipeline_mode=pl.Buffered(1) to the weight BlockSpecs (constant index_map).

    flops = 2 * m_p * (in_p * h_p + h_p * out_p + (in_p * out_p if has_shortcut else 0))
    bytes_accessed = (x_c.size * x_c.dtype.itemsize
                      + m_p * out_p * jnp.dtype(out_dtype).itemsize
                      + w0_c.size * w0_c.dtype.itemsize
                      + w1_c.size * w1_c.dtype.itemsize
                      + b0_f.size * 4 + b1_f.size * 4)

    compiler_params = pltpu.CompilerParams(
        dimension_semantics=("parallel",),  # shards the M grid across TCs on v7x
        vmem_limit_bytes=min((_vmem_capacity_bytes() * 3) // 4, 96 * 1024 * 1024),
    )

    if has_shortcut:
        assert ws is not None
        ws_c = jnp.pad(ws.astype(cdt), ((0, in_p - size_in), (0, out_p - size_out)))
        bytes_accessed += ws_c.size * ws_c.dtype.itemsize
        out = pl.pallas_call(
            _resblock_kernel_shortcut,
            out_shape=jax.ShapeDtypeStruct((m_p, out_p), out_dtype),
            grid=grid,
            in_specs=[x_spec, w0_spec, b0_spec, w1_spec, b1_spec,
                      pl.BlockSpec((in_p, out_p), lambda i: (0, 0))],
            out_specs=o_spec,
            compiler_params=compiler_params,
            cost_estimate=pl.CostEstimate(flops=flops, transcendentals=0,
                                          bytes_accessed=bytes_accessed),
        )(x_c, w0_c, b0_f, w1_c, b1_f, ws_c)
    else:
        out = pl.pallas_call(
            _resblock_kernel_identity,
            out_shape=jax.ShapeDtypeStruct((m_p, out_p), out_dtype),
            grid=grid,
            in_specs=[x_spec, w0_spec, b0_spec, w1_spec, b1_spec],
            out_specs=o_spec,
            compiler_params=compiler_params,
            cost_estimate=pl.CostEstimate(flops=flops, transcendentals=0,
                                          bytes_accessed=bytes_accessed),
        )(x_c, w0_c, b0_f, w1_c, b1_f)

    return out[:m, :size_out]


# --------------------------------------------------------------------------- #
# Parameter init + pure-JAX reference
# --------------------------------------------------------------------------- #
def init_params(key, size_in, size_out=None, size_h=None, zero_init_fc1=True):
    """Parameter init mirroring the PyTorch module (weights already transposed)."""
    if size_out is None:
        size_out = size_in
    if size_h is None:
        size_h = min(size_in, size_out)

    k0w, k0b, k1w, k1b, ksw = jax.random.split(key, 5)
    lim0 = 1.0 / jnp.sqrt(size_in)
    limh = 1.0 / jnp.sqrt(size_h)

    w0 = jax.random.uniform(k0w, (size_in, size_h), jnp.float32, -lim0, lim0)
    b0 = jax.random.uniform(k0b, (1, size_h), jnp.float32, -lim0, lim0)
    if zero_init_fc1:
        w1 = jnp.zeros((size_h, size_out), jnp.float32)  # nn.init.zeros_(fc_1.weight)
    else:
        w1 = jax.random.uniform(k1w, (size_h, size_out), jnp.float32, -limh, limh)
    b1 = jax.random.uniform(k1b, (1, size_out), jnp.float32, -limh, limh)

    ws = None if size_in == size_out else jax.random.uniform(
        ksw, (size_in, size_out), jnp.float32, -lim0, lim0)
    return w0, b0, w1, b1, ws


def reference_forward(x, w0, b0, w1, b1, ws):
    net = jnp.maximum(x, 0.0) @ w0 + b0
    dx = jnp.maximum(net, 0.0) @ w1 + b1
    x_s = x @ ws if ws is not None else x
    return x_s + dx


if __name__ == "__main__":
    key = jax.random.PRNGKey(0)
    kx1, kp1, kx2, kp2 = jax.random.split(key, 4)

    # --- Test 1: shortcut path, f32, small shapes (M=16, 32 -> 32 -> 64). ---
    # (w1 randomized instead of the module's zero-init so the fc_1 matmul is
    #  actually exercised; forward semantics are identical.)
    M1, in1, out1 = 16, 32, 64
    x1 = jax.random.normal(kx1, (M1, in1), jnp.float32)
    w0, b0, w1, b1, ws = init_params(kp1, in1, out1, zero_init_fc1=False)

    o1 = resnet_block_fc(x1, w0, b0, w1, b1, ws, has_shortcut=True)
    o1 = jax.block_until_ready(o1)
    r1 = reference_forward(x1, w0, b0, w1, b1, ws)
    assert o1.shape == (M1, out1)
    assert jnp.allclose(o1, r1, atol=1e-5, rtol=1e-5), "shortcut f32 mismatch"

    # --- Test 2: identity shortcut, bf16 compute path, tiled grid (M=256, TM=64). ---
    M2, in2 = 256, 64
    x2 = jax.random.normal(kx2, (M2, in2), jnp.float32)
    w0i, b0i, w1i, b1i, _ = init_params(kp2, in2, zero_init_fc1=False)

    o2 = resnet_block_fc(x2, w0i, b0i, w1i, b1i, None, has_shortcut=False,
                         compute_dtype=jnp.bfloat16, block_m=64)
    o2 = jax.block_until_ready(o2)
    r2 = reference_forward(x2, w0i, b0i, w1i, b1i, None)
    assert o2.shape == (M2, in2)
    assert jnp.allclose(o2.astype(jnp.float32), r2, atol=5e-2, rtol=5e-2), \
        "identity bf16 mismatch"

    print("KERNEL_OK")
</pallas_src>

<mosaic_0001>
module attributes {stable_mosaic.version = 11 : i64} {
  func.func @_resblock_kernel_shortcut(%arg0: i32, %arg1: memref<16x128xf32, #tpu.memory_space<vmem>>, %arg2: memref<128x128xf32, #tpu.memory_space<vmem>>, %arg3: memref<1x128xf32, #tpu.memory_space<vmem>>, %arg4: memref<128x128xf32, #tpu.memory_space<vmem>>, %arg5: memref<1x128xf32, #tpu.memory_space<vmem>>, %arg6: memref<128x128xf32, #tpu.memory_space<vmem>>, %arg7: memref<16x128xf32, #tpu.memory_space<vmem>>) attributes {dimension_semantics = [#tpu.dimension_semantics<parallel>], iteration_bounds = array<i64: 1>, scalar_prefetch = 0 : i64, scratch_operands = 0 : i64, tpu.core_type = #tpu.core_type<tc>, window_params = [{transform_indices = @transform_0, window_bounds = array<i64: 16, 128>}, {pipeline_mode = #tpu.pipeline_mode<synchronous>, transform_indices = @transform_1, window_bounds = array<i64: 128, 128>}, {pipeline_mode = #tpu.pipeline_mode<synchronous>, transform_indices = @transform_2, window_bounds = array<i64: 1, 128>}, {pipeline_mode = #tpu.pipeline_mode<synchronous>, transform_indices = @transform_3, window_bounds = array<i64: 128, 128>}, {pipeline_mode = #tpu.pipeline_mode<synchronous>, transform_indices = @transform_4, window_bounds = array<i64: 1, 128>}, {pipeline_mode = #tpu.pipeline_mode<synchronous>, transform_indices = @transform_5, window_bounds = array<i64: 128, 128>}, {transform_indices = @transform_6, window_bounds = array<i64: 16, 128>}]} {
    %c0 = arith.constant 0 : index
    %c0_0 = arith.constant 0 : index
    %0 = vector.load %arg1[%c0, %c0_0] : memref<16x128xf32, #tpu.memory_space<vmem>>, vector<16x128xf32>
    %cst = arith.constant 0.000000e+00 : f32
    %1 = vector.broadcast %cst : f32 to vector<16x128xf32>
    %2 = arith.maximumf %0, %1 : vector<16x128xf32>
    %c0_1 = arith.constant 0 : index
    %c0_2 = arith.constant 0 : index
    %3 = vector.load %arg2[%c0_1, %c0_2] : memref<128x128xf32, #tpu.memory_space<vmem>>, vector<128x128xf32>
    %cst_3 = arith.constant dense<0.000000e+00> : vector<16x128xf32>
    %4 = tpu.matmul %2, %3, %cst_3 {dimension_numbers = #tpu.dot_dimension_numbers<[1], [0], [0], [1], [0, 0, 1, 1], [], []>} : vector<16x128xf32>, vector<128x128xf32>, vector<16x128xf32> -> vector<16x128xf32>
    %c0_4 = arith.constant 0 : index
    %c0_5 = arith.constant 0 : index
    %5 = vector.load %arg3[%c0_4, %c0_5] : memref<1x128xf32, #tpu.memory_space<vmem>>, vector<1x128xf32>
    %6 = vector.broadcast %5 : vector<1x128xf32> to vector<16x128xf32>
    %7 = arith.addf %4, %6 : vector<16x128xf32>
    %cst_6 = arith.constant 0.000000e+00 : f32
    %8 = vector.broadcast %cst_6 : f32 to vector<16x128xf32>
    %9 = arith.maximumf %7, %8 : vector<16x128xf32>
    %c0_7 = arith.constant 0 : index
    %c0_8 = arith.constant 0 : index
    %10 = vector.load %arg4[%c0_7, %c0_8] : memref<128x128xf32, #tpu.memory_space<vmem>>, vector<128x128xf32>
    %cst_9 = arith.constant dense<0.000000e+00> : vector<16x128xf32>
    %11 = tpu.matmul %9, %10, %cst_9 {dimension_numbers = #tpu.dot_dimension_numbers<[1], [0], [0], [1], [0, 0, 1, 1], [], []>} : vector<16x128xf32>, vector<128x128xf32>, vector<16x128xf32> -> vector<16x128xf32>
    %c0_10 = arith.constant 0 : index
    %c0_11 = arith.constant 0 : index
    %12 = vector.load %arg5[%c0_10, %c0_11] : memref<1x128xf32, #tpu.memory_space<vmem>>, vector<1x128xf32>
    %13 = vector.broadcast %12 : vector<1x128xf32> to vector<16x128xf32>
    %14 = arith.addf %11, %13 : vector<16x128xf32>
    %c0_12 = arith.constant 0 : index
    %c0_13 = arith.constant 0 : index
    %15 = vector.load %arg6[%c0_12, %c0_13] : memref<128x128xf32, #tpu.memory_space<vmem>>, vector<128x128xf32>
    %cst_14 = arith.constant dense<0.000000e+00> : vector<16x128xf32>
    %16 = tpu.matmul %0, %15, %cst_14 {dimension_numbers = #tpu.dot_dimension_numbers<[1], [0], [0], [1], [0, 0, 1, 1], [], []>} : vector<16x128xf32>, vector<128x128xf32>, vector<16x128xf32> -> vector<16x128xf32>
    %17 = arith.addf %16, %14 : vector<16x128xf32>
    %c0_15 = arith.constant 0 : index
    %c0_16 = arith.constant 0 : index
    %18 = vector.load %arg7[%c0_15, %c0_16] : memref<16x128xf32, #tpu.memory_space<vmem>>, vector<16x128xf32>
    tpu.vector_store %arg7[%c0_15, %c0_16], %17 {strides = array<i32>} : memref<16x128xf32, #tpu.memory_space<vmem>>, vector<16x128xf32>,
    return
  }
  func.func @transform_0(%arg0: i32) -> (i32, i32) {
    %c0_i32 = arith.constant 0 : i32
    %c0_i32_0 = arith.constant 0 : i32
    return %arg0, %c0_i32 : i32, i32
  }
  func.func @transform_1(%arg0: i32) -> (i32, i32) {
    %c0_i32 = arith.constant 0 : i32
    %c0_i32_0 = arith.constant 0 : i32
    %c0_i32_1 = arith.constant 0 : i32
    return %c0_i32, %c0_i32_0 : i32, i32
  }
  func.func @transform_2(%arg0: i32) -> (i32, i32) {
    %c0_i32 = arith.constant 0 : i32
    %c0_i32_0 = arith.constant 0 : i32
    %c0_i32_1 = arith.constant 0 : i32
    return %c0_i32, %c0_i32_0 : i32, i32
  }
  func.func @transform_3(%arg0: i32) -> (i32, i32) {
    %c0_i32 = arith.constant 0 : i32
    %c0_i32_0 = arith.constant 0 : i32
    %c0_i32_1 = arith.constant 0 : i32
    return %c0_i32, %c0_i32_0 : i32, i32
  }
  func.func @transform_4(%arg0: i32) -> (i32, i32) {
    %c0_i32 = arith.constant 0 : i32
    %c0_i32_0 = arith.constant 0 : i32
    %c0_i32_1 = arith.constant 0 : i32
    return %c0_i32, %c0_i32_0 : i32, i32
  }
  func.func @transform_5(%arg0: i32) -> (i32, i32) {
    %c0_i32 = arith.constant 0 : i32
    %c0_i32_0 = arith.constant 0 : i32
    %c0_i32_1 = arith.constant 0 : i32
    return %c0_i32, %c0_i32_0 : i32, i32
  }
  func.func @transform_6(%arg0: i32) -> (i32, i32) {
    %c0_i32 = arith.constant 0 : i32
    %c0_i32_0 = arith.constant 0 : i32
    return %arg0, %c0_i32 : i32, i32
  }
}

</mosaic_0001>

<llo_original>
// kernel: resnet_block_fc.1
$region0: #{resnet_block_fc.1}
  #allocation0 [shape = 'u32[]', space=smem, size = 0x4, offset = 0x4, fixed_abs, tag = 'smem constant byte address 0x4 - core index']
  #allocation1 [shape = 'u32[72,128]{1,0:T(1,128)}', space=vmem, size = 0x9000, scoped, tag = 'internal scratch']
  %s0 = inlined_call_operand.vmem [shape: f32[16,128], index: 0, kind: input, shape index: {}]
  %s1 = inlined_call_operand.vmem [shape: f32[128,128], index: 1, kind: input, shape index: {}]
  %s2 = inlined_call_operand.vmem [shape: f32[1,128], index: 2, kind: input, shape index: {}]
  %s3 = inlined_call_operand.vmem [shape: f32[128,128], index: 3, kind: input, shape index: {}]
  %s4 = inlined_call_operand.vmem [shape: f32[1,128], index: 4, kind: input, shape index: {}]
  %s5 = inlined_call_operand.vmem [shape: f32[128,128], index: 5, kind: input, shape index: {}]
  %s6 = inlined_call_operand.hbm [shape: f32[16,128], index: 6, kind: output, shape index: {}]
  %s7 = sld [smem:[#allocation0]]
  $region34: #{resnet_block_fc.1} parent=0
    _
  %s9 = ssub.s32 1, %s7
  %s10 = scalar_select 0, %s9, %s7
  $region1: #{resnet_block_fc.1} parent=0
    #allocation2 [shape = 'u8[8192]{0}', space=vmem, size = 0x2000, scoped, tag = 'output window, operand 0, single buffered']
    #allocation3 [shape = 's32[1]{0}', space=sflag, size = 0x4, scoped, tag = 'scoped memory for resnet_block_fc.1']
    %11 = vsyncpa [#allocation3], 0
    // Predicated region
    $region2: #{resnet_block_fc.1} parent=1 // pred_check
      _
    $region3: #{resnet_block_fc.1} parent=1 // pred_check_branch
      %13 = sbr.rel (0) target = $region5
    $region4: #{resnet_block_fc.1} parent=1 // pred_region
      _
    $region5: #{resnet_block_fc.1} parent=1 // pred_fallthru
      _
    // Predicated region
    $region6: #{resnet_block_fc.1} parent=1 // pred_check
      _
    $region7: #{resnet_block_fc.1} parent=1 // pred_check_branch
      %15 = sbr.rel (0) target = $region9
    $region8: #{resnet_block_fc.1} parent=1 // pred_region
      _
    $region9: #{resnet_block_fc.1} parent=1 // pred_fallthru
      _
    // Predicated region
    $region10: #{resnet_block_fc.1} parent=1 // pred_check
      _
    $region11: #{resnet_block_fc.1} parent=1 // pred_check_branch
      %17 = sbr.rel (0) target = $region13
    $region12: #{resnet_block_fc.1} parent=1 // pred_region
      _
    $region13: #{resnet_block_fc.1} parent=1 // pred_fallthru
      _
    // Predicated region
    $region14: #{resnet_block_fc.1} parent=1 // pred_check
      _
    $region15: #{resnet_block_fc.1} parent=1 // pred_check_branch
      %19 = sbr.rel (0) target = $region17
    $region16: #{resnet_block_fc.1} parent=1 // pred_region
      _
    $region17: #{resnet_block_fc.1} parent=1 // pred_fallthru
      _
    // Predicated region
    $region18: #{resnet_block_fc.1} parent=1 // pred_check
      _
    $region19: #{resnet_block_fc.1} parent=1 // pred_check_branch
      %21 = sbr.rel (0) target = $region21
    $region20: #{resnet_block_fc.1} parent=1 // pred_region
      _
    $region21: #{resnet_block_fc.1} parent=1 // pred_fallthru
      _
    // Predicated region
    $region22: #{resnet_block_fc.1} parent=1 // pred_check
      _
    $region23: #{resnet_block_fc.1} parent=1 // pred_check_branch
      %23 = sbr.rel (0) target = $region25
    $region24: #{resnet_block_fc.1} parent=1 // pred_region
      _
    $region25: #{resnet_block_fc.1} parent=1 // pred_fallthru
      _
    %v24 = vld [vmem:[%s0] sm:$0xff]
    %v25 = vld [vmem:[%s0 + $0x8] sm:$0xff]
    %v26 = vmax.f32 %v24, 0.0
    %v27 = vmax.f32 %v25, 0.0
    %v28 = vld [vmem:[%s1] sm:$0xff]
    %v29 = vld [vmem:[%s1 + $0x8] sm:$0xff]
    %v30 = vld [vmem:[%s1 + $0x10] sm:$0xff]
    %v31 = vld [vmem:[%s1 + $0x18] sm:$0xff]
    %v32 = vld [vmem:[%s1 + $0x20] sm:$0xff]
    %v33 = vld [vmem:[%s1 + $0x28] sm:$0xff]
    %v34 = vld [vmem:[%s1 + $0x30] sm:$0xff]
    %v35 = vld [vmem:[%s1 + $0x38] sm:$0xff]
    %v36 = vld [vmem:[%s1 + $0x40] sm:$0xff]
    %v37 = vld [vmem:[%s1 + $0x48] sm:$0xff]
    %v38 = vld [vmem:[%s1 + $0x50] sm:$0xff]
    %v39 = vld [vmem:[%s1 + $0x58] sm:$0xff]
    %v40 = vld [vmem:[%s1 + $0x60] sm:$0xff]
    %v41 = vld [vmem:[%s1 + $0x68] sm:$0xff]
    %v42 = vld [vmem:[%s1 + $0x70] sm:$0xff]
    %v43 = vld [vmem:[%s1 + $0x78] sm:$0xff]
    %v44 = vld [vmem:[%s2] sm:$0x1]
    %v46 = vperm.slane %v44, 0
    %48 = vmatpush.msra.mxu0 %v43
    %49 = vmatpush.msra.mxu0 %v42
    %50 = vmatpush.msra.mxu0 %v41
    %51 = vmatpush.msra.mxu0 %v40
    %52 = vmatpush.msra.mxu0 %v39
    %53 = vmatpush.msra.mxu0 %v38
    %54 = vmatpush.msra.mxu0 %v37
    %55 = vmatpush.msra.mxu0 %v36
    %56 = vmatpush.msra.mxu0 %v35
    %57 = vmatpush.msra.mxu0 %v34
    %58 = vmatpush.msra.mxu0 %v33
    %59 = vmatpush.msra.mxu0 %v32
    %60 = vmatpush.msra.mxu0 %v31
    %61 = vmatpush.msra.mxu0 %v30
    %62 = vmatpush.msra.mxu0 %v29
    %63 = vmatpush.msra.mxu0 %v28
    %64 = vmatmul.f32.gmra.mxu0 %v26
    %v65 = vpop.f32.mrf.mxu0
    %v66 = vadd.f32 %v46, %v65
    %67 = vmatmul.f32.gmra.mxu0 %v27
    %v68 = vpop.f32.mrf.mxu0
    %v69 = vadd.f32 %v46, %v68
    %70 = vdwg.mxu0
    %v71 = vmax.f32 %v66, 0.0
    %v72 = vmax.f32 %v69, 0.0
    %v73 = vld [vmem:[%s3] sm:$0xff]
    %v74 = vld [vmem:[%s3 + $0x8] sm:$0xff]
    %v75 = vld [vmem:[%s3 + $0x10] sm:$0xff]
    %v76 = vld [vmem:[%s3 + $0x18] sm:$0xff]
    %v77 = vld [vmem:[%s3 + $0x20] sm:$0xff]
    %v78 = vld [vmem:[%s3 + $0x28] sm:$0xff]
    %v79 = vld [vmem:[%s3 + $0x30] sm:$0xff]
    %v80 = vld [vmem:[%s3 + $0x38] sm:$0xff]
    %v81 = vld [vmem:[%s3 + $0x40] sm:$0xff]
    %v82 = vld [vmem:[%s3 + $0x48] sm:$0xff]
    %v83 = vld [vmem:[%s3 + $0x50] sm:$0xff]
    %v84 = vld [vmem:[%s3 + $0x58] sm:$0xff]
    %v85 = vld [vmem:[%s3 + $0x60] sm:$0xff]
    %v86 = vld [vmem:[%s3 + $0x68] sm:$0xff]
    %v87 = vld [vmem:[%s3 + $0x70] sm:$0xff]
    %v88 = vld [vmem:[%s3 + $0x78] sm:$0xff]
    %v89 = vld [vmem:[%s4] sm:$0x1]
    %v91 = vperm.slane %v89, 0
    %93 = vmatpush.msra.mxu0 %v88
    %94 = vmatpush.msra.mxu0 %v87
    %95 = vmatpush.msra.mxu0 %v86
    %96 = vmatpush.msra.mxu0 %v85
    %97 = vmatpush.msra.mxu0 %v84
    %98 = vmatpush.msra.mxu0 %v83
    %99 = vmatpush.msra.mxu0 %v82
    %100 = vmatpush.msra.mxu0 %v81
    %101 = vmatpush.msra.mxu0 %v80
    %102 = vmatpush.msra.mxu0 %v79
    %103 = vmatpush.msra.mxu0 %v78
    %104 = vmatpush.msra.mxu0 %v77
    %105 = vmatpush.msra.mxu0 %v76
    %106 = vmatpush.msra.mxu0 %v75
    %107 = vmatpush.msra.mxu0 %v74
    %108 = vmatpush.msra.mxu0 %v73
    %109 = vmatmul.f32.gmra.mxu0 %v71
    %v110 = vpop.f32.mrf.mxu0
    %v111 = vadd.f32 %v91, %v110
    %112 = vmatmul.f32.gmra.mxu0 %v72
    %v113 = vpop.f32.mrf.mxu0
    %v114 = vadd.f32 %v91, %v113
    %115 = vdwg.mxu0
    %v116 = vld [vmem:[%s5] sm:$0xff]
    %v117 = vld [vmem:[%s5 + $0x8] sm:$0xff]
    %v118 = vld [vmem:[%s5 + $0x10] sm:$0xff]
    %v119 = vld [vmem:[%s5 + $0x18] sm:$0xff]
    %v120 = vld [vmem:[%s5 + $0x20] sm:$0xff]
    %v121 = vld [vmem:[%s5 + $0x28] sm:$0xff]
    %v122 = vld [vmem:[%s5 + $0x30] sm:$0xff]
    %v123 = vld [vmem:[%s5 + $0x38] sm:$0xff]
    %v124 = vld [vmem:[%s5 + $0x40] sm:$0xff]
    %v125 = vld [vmem:[%s5 + $0x48] sm:$0xff]
    %v126 = vld [vmem:[%s5 + $0x50] sm:$0xff]
    %v127 = vld [vmem:[%s5 + $0x58] sm:$0xff]
    %v128 = vld [vmem:[%s5 + $0x60] sm:$0xff]
    %v129 = vld [vmem:[%s5 + $0x68] sm:$0xff]
    %v130 = vld [vmem:[%s5 + $0x70] sm:$0xff]
    %v131 = vld [vmem:[%s5 + $0x78] sm:$0xff]
    %132 = vmatpush.msra.mxu0 %v131
    %133 = vmatpush.msra.mxu0 %v130
    %134 = vmatpush.msra.mxu0 %v129
    %135 = vmatpush.msra.mxu0 %v128
    %136 = vmatpush.msra.mxu0 %v127
    %137 = vmatpush.msra.mxu0 %v126
    %138 = vmatpush.msra.mxu0 %v125
    %139 = vmatpush.msra.mxu0 %v124
    %140 = vmatpush.msra.mxu0 %v123
    %141 = vmatpush.msra.mxu0 %v122
    %142 = vmatpush.msra.mxu0 %v121
    %143 = vmatpush.msra.mxu0 %v120
    %144 = vmatpush.msra.mxu0 %v119
    %145 = vmatpush.msra.mxu0 %v118
    %146 = vmatpush.msra.mxu0 %v117
    %147 = vmatpush.msra.mxu0 %v116
    %148 = vmatmul.f32.gmra.mxu0 %v24
    %v149 = vpop.f32.mrf.mxu0
    %v150 = vadd.f32 %v111, %v149
    %151 = vmatmul.f32.gmra.mxu0 %v25
    %v152 = vpop.f32.mrf.mxu0
    %v153 = vadd.f32 %v114, %v152
    %154 = vdwg.mxu0
    %155 = vst [vmem:[#allocation2] sm:$0xff] %v150
    %156 = vst [vmem:[#allocation2 + $0x8] sm:$0xff] %v153
    // Predicated region
    $region26: #{resnet_block_fc.1} parent=1 // pred_check
      _
    $region27: #{resnet_block_fc.1} parent=1 // pred_check_branch
      %158 = sbr.rel (0) target = $region29
    $region28: #{resnet_block_fc.1} parent=1 // pred_region
      %160 = vsyncadd [#allocation3], 0
      %s161 = sshll.u32 [#allocation2], 4
      %s162 = int_to_ptr.vmem [resolvable:$true] %s161
      %s163 = sshll.u32 %s6, 4
      %s164 = int_to_ptr.hbm [resolvable:$true] %s163
      %169 = dma.vmem_to_hbm [thread:$0]  %s162, 256, %s164, [#allocation3], 128, 128, 8
    $region29: #{resnet_block_fc.1} parent=1 // pred_fallthru
      _
    // Predicated region
    $region30: #{resnet_block_fc.1} parent=1 // pred_check
      _
    $region31: #{resnet_block_fc.1} parent=1 // pred_check_branch
      %171 = sbr.rel (0) target = $region33
    $region32: #{resnet_block_fc.1} parent=1 // pred_region
      %173 = dma.done [#allocation3], 256
    $region33: #{resnet_block_fc.1} parent=1 // pred_fallthru
      _
    %174 = vsyncpa [#allocation3], 1

</llo_original>
